<compile_context>
chip_gen: v5e
topology: v5e:2x2
jax: 0.10.0
libtpu: 0.0.40
codegen_flags: <defaults>
</compile_context>

<pallas_src>
import jax
import jax.numpy as jnp
from jax.experimental import pallas as pl
from jax.experimental.pallas import tpu as pltpu


def _round_up(x, m):
    return ((x + m - 1) // m) * m


def _fused_mlp2_kernel(x_ref, w1_ref, b1_ref, w2_ref, b2_ref, o_ref):
    """relu(x @ W1 + b1) @ W2 + b2   (Linear -> ReLU -> Linear -> Identity)."""
    x = x_ref[...]
    b1 = b1_ref[...]            # read biases once per body (no re-broadcast)
    b2 = b2_ref[...]
    h = jnp.dot(x, w1_ref[...], preferred_element_type=jnp.float32) + b1
    h = jnp.maximum(h, 0.0)     # ReLU
    y = jnp.dot(h, w2_ref[...], preferred_element_type=jnp.float32) + b2
    o_ref[...] = y.astype(o_ref.dtype)   # Identity activation on layer 2


def _choose_tiling(n_rows, max_tile_rows=512):
    """Row tile: as large as max_tile_rows, multiple of 8, and (when possible)
    giving >= 2 grid steps so megacore / v7x dual-TC sharding has work."""
    rows8 = _round_up(max(n_rows, 1), 8)
    if rows8 <= 8:
        return 8, 8
    half = _round_up(pl.cdiv(rows8, 2), 8)
    tile = min(max_tile_rows, half)
    return tile, _round_up(rows8, tile)


def fused_mlp2(x, w1, b1, w2, b2, *, max_tile_rows=512):
    """y = relu(x @ w1 + b1) @ w2 + b2, row-tiled Pallas kernel.

    x : (E, D_in) f32;  w1:(D_in,H)  b1:(1,H);  w2:(H,D_out)  b2:(1,D_out)
    Any E is accepted: rows are zero-padded to a tile multiple internally and
    the padded rows are sliced off before returning.
    """
    E, d_in = x.shape
    h = w1.shape[1]
    d_out = w2.shape[1]

    tile_rows, e_pad = _choose_tiling(E, max_tile_rows)
    if e_pad != E:
        x = jnp.pad(x, ((0, e_pad - E), (0, 0)))

    grid = (e_pad // tile_rows,)
    out = pl.pallas_call(
        _fused_mlp2_kernel,
        out_shape=jax.ShapeDtypeStruct((e_pad, d_out), x.dtype),
        grid_spec=pltpu.PrefetchScalarGridSpec(
            num_scalar_prefetch=0,
            grid=grid,
            in_specs=[
                pl.BlockSpec((tile_rows, d_in), lambda i: (i, 0)),  # x tile (streamed)
                pl.BlockSpec((d_in, h), lambda i: (0, 0)),          # W1 (VMEM-resident)
                pl.BlockSpec((1, h), lambda i: (0, 0)),             # b1
                pl.BlockSpec((h, d_out), lambda i: (0, 0)),         # W2
                pl.BlockSpec((1, d_out), lambda i: (0, 0)),         # b2
            ],
            out_specs=pl.BlockSpec((tile_rows, d_out), lambda i: (i, 0)),
        ),
        compiler_params=pltpu.CompilerParams(
            dimension_semantics=("parallel",)),
    )(x, w1, b1, w2, b2)
    return out[:E]


def init_linear(key, d_in, d_out):
    """Deterministic Linear params (PyTorch-style uniform bound), stored as
    (in, out) weight + (1, out) bias for the row-major Pallas matmul."""
    kw, kb = jax.random.split(key)
    bound = 1.0 / jnp.sqrt(jnp.float32(d_in))
    w = jax.random.uniform(kw, (d_in, d_out), jnp.float32, -bound, bound)
    b = jax.random.uniform(kb, (1, d_out), jnp.float32, -bound, bound)
    return w, b


class EAttentionModule1:
    """JAX/Pallas port of E_AttentionModule1 with a small synthetic config:
         G_A_L_S  = [32, 16, 1], G_A_A  = ['ReLU', 'Identity']
         G_A_L_S2 = [24, 16, 1], G_A_A2 = ['ReLU', 'Identity']
         bias=True, use_bn=False, drop_prob=None
       Both heads are evaluated in ONE fused Pallas kernel by packing the two
       MLPs into block-diagonal weights (lane-concat inputs, 2-wide output).
    """

    def __init__(self, key, layer_sizes=(32, 16, 1), layer_sizes_lang=(24, 16, 1)):
        k1, k2, k3, k4 = jax.random.split(key, 4)
        self.w1, self.b1 = init_linear(k1, layer_sizes[0], layer_sizes[1])
        self.w2, self.b2 = init_linear(k2, layer_sizes[1], layer_sizes[2])
        self.lw1, self.lb1 = init_linear(k3, layer_sizes_lang[0], layer_sizes_lang[1])
        self.lw2, self.lb2 = init_linear(k4, layer_sizes_lang[1], layer_sizes_lang[2])

        d1, h1, o1 = layer_sizes
        d2, h2, o2 = layer_sizes_lang
        # Block-diagonal first layer: (d1+d2, h1+h2)
        w1f = jnp.zeros((d1 + d2, h1 + h2), jnp.float32)
        w1f = w1f.at[:d1, :h1].set(self.w1)
        w1f = w1f.at[d1:, h1:].set(self.lw1)
        b1f = jnp.concatenate([self.b1, self.lb1], axis=1)
        # Block-stacked second layer: (h1+h2, o1+o2); col 0 = a_feat head,
        # col 1 = a_feat_lang head.
        w2f = jnp.zeros((h1 + h2, o1 + o2), jnp.float32)
        w2f = w2f.at[:h1, :o1].set(self.w2)
        w2f = w2f.at[h1:, o1:].set(self.lw2)
        b2f = jnp.concatenate([self.b2, self.lb2], axis=1)
        self._fused = (w1f, b1f, w2f, b2f)
        self._o1 = o1

    def __call__(self, edge_data):
        w1f, b1f, w2f, b2f = self._fused
        x = jnp.concatenate([edge_data['e_f'], edge_data['e_f_lang']], axis=1)
        y = fused_mlp2(x, w1f, b1f, w2f, b2f)
        return {'a_feat': y[:, :self._o1], 'a_feat_lang': y[:, self._o1:]}


def _reference(edge_data, mod):
    """Pure-JAX reference for correctness checking (unfused weights)."""
    def mlp(x, w1, b1, w2, b2):
        return jnp.maximum(x @ w1 + b1, 0.0) @ w2 + b2
    return {
        'a_feat': mlp(edge_data['e_f'], mod.w1, mod.b1, mod.w2, mod.b2),
        'a_feat_lang': mlp(edge_data['e_f_lang'], mod.lw1, mod.lb1, mod.lw2, mod.lb2),
    }


if __name__ == "__main__":
    key = jax.random.PRNGKey(0)
    k_params, k_ef, k_efl = jax.random.split(key, 3)

    E = 250          # number of graph edges (deliberately NOT a tile multiple)
    D1, D2 = 32, 24  # edge feature dim / edge language-feature dim

    edge_data = {
        'e_f': jax.random.normal(k_ef, (E, D1), jnp.float32),
        'e_f_lang': jax.random.normal(k_efl, (E, D2), jnp.float32),
    }

    module = EAttentionModule1(k_params)

    out = module(edge_data)
    out = jax.tree_util.tree_map(jax.block_until_ready, out)

    ref = _reference(edge_data, module)
    assert out['a_feat'].shape == (E, 1)
    assert out['a_feat_lang'].shape == (E, 1)
    assert jnp.allclose(out['a_feat'], ref['a_feat'], atol=1e-5)
    assert jnp.allclose(out['a_feat_lang'], ref['a_feat_lang'], atol=1e-5)

    print("KERNEL_OK")
</pallas_src>

<mosaic_0001>
module attributes {stable_mosaic.version = 11 : i64} {
  func.func @_fused_mlp2_kernel(%arg0: i32, %arg1: memref<128x56xf32, #tpu.memory_space<vmem>>, %arg2: memref<56x32xf32, #tpu.memory_space<vmem>>, %arg3: memref<1x32xf32, #tpu.memory_space<vmem>>, %arg4: memref<32x2xf32, #tpu.memory_space<vmem>>, %arg5: memref<1x2xf32, #tpu.memory_space<vmem>>, %arg6: memref<128x2xf32, #tpu.memory_space<vmem>>) attributes {dimension_semantics = [#tpu.dimension_semantics<parallel>], iteration_bounds = array<i64: 2>, scalar_prefetch = 0 : i64, scratch_operands = 0 : i64, tpu.core_type = #tpu.core_type<tc>, window_params = [{transform_indices = @transform_0, window_bounds = array<i64: 128, 56>}, {pipeline_mode = #tpu.pipeline_mode<synchronous>, transform_indices = @transform_1, window_bounds = array<i64: 56, 32>}, {pipeline_mode = #tpu.pipeline_mode<synchronous>, transform_indices = @transform_2, window_bounds = array<i64: 1, 32>}, {pipeline_mode = #tpu.pipeline_mode<synchronous>, transform_indices = @transform_3, window_bounds = array<i64: 32, 2>}, {pipeline_mode = #tpu.pipeline_mode<synchronous>, transform_indices = @transform_4, window_bounds = array<i64: 1, 2>}, {transform_indices = @transform_5, window_bounds = array<i64: 128, 2>}]} {
    %c0 = arith.constant 0 : index
    %c0_0 = arith.constant 0 : index
    %0 = vector.load %arg1[%c0, %c0_0] : memref<128x56xf32, #tpu.memory_space<vmem>>, vector<128x56xf32>
    %c0_1 = arith.constant 0 : index
    %c0_2 = arith.constant 0 : index
    %1 = vector.load %arg3[%c0_1, %c0_2] : memref<1x32xf32, #tpu.memory_space<vmem>>, vector<1x32xf32>
    %c0_3 = arith.constant 0 : index
    %c0_4 = arith.constant 0 : index
    %2 = vector.load %arg5[%c0_3, %c0_4] : memref<1x2xf32, #tpu.memory_space<vmem>>, vector<1x2xf32>
    %c0_5 = arith.constant 0 : index
    %c0_6 = arith.constant 0 : index
    %3 = vector.load %arg2[%c0_5, %c0_6] : memref<56x32xf32, #tpu.memory_space<vmem>>, vector<56x32xf32>
    %cst = arith.constant dense<0.000000e+00> : vector<128x32xf32>
    %4 = tpu.matmul %0, %3, %cst {dimension_numbers = #tpu.dot_dimension_numbers<[1], [0], [0], [1], [0, 0, 1, 1], [], []>} : vector<128x56xf32>, vector<56x32xf32>, vector<128x32xf32> -> vector<128x32xf32>
    %5 = vector.broadcast %1 : vector<1x32xf32> to vector<128x32xf32>
    %6 = arith.addf %4, %5 : vector<128x32xf32>
    %cst_7 = arith.constant 0.000000e+00 : f32
    %7 = vector.broadcast %cst_7 : f32 to vector<128x32xf32>
    %8 = arith.maximumf %6, %7 : vector<128x32xf32>
    %c0_8 = arith.constant 0 : index
    %c0_9 = arith.constant 0 : index
    %9 = vector.load %arg4[%c0_8, %c0_9] : memref<32x2xf32, #tpu.memory_space<vmem>>, vector<32x2xf32>
    %cst_10 = arith.constant dense<0.000000e+00> : vector<128x2xf32>
    %10 = tpu.matmul %8, %9, %cst_10 {dimension_numbers = #tpu.dot_dimension_numbers<[1], [0], [0], [1], [0, 0, 1, 1], [], []>} : vector<128x32xf32>, vector<32x2xf32>, vector<128x2xf32> -> vector<128x2xf32>
    %11 = vector.broadcast %2 : vector<1x2xf32> to vector<128x2xf32>
    %12 = arith.addf %10, %11 : vector<128x2xf32>
    %c0_11 = arith.constant 0 : index
    %c0_12 = arith.constant 0 : index
    %13 = vector.load %arg6[%c0_11, %c0_12] : memref<128x2xf32, #tpu.memory_space<vmem>>, vector<128x2xf32>
    tpu.vector_store %arg6[%c0_11, %c0_12], %12 {strides = array<i32>} : memref<128x2xf32, #tpu.memory_space<vmem>>, vector<128x2xf32>,
    return
  }
  func.func @transform_0(%arg0: i32) -> (i32, i32) {
    %c0_i32 = arith.constant 0 : i32
    %c0_i32_0 = arith.constant 0 : i32
    return %arg0, %c0_i32 : i32, i32
  }
  func.func @transform_1(%arg0: i32) -> (i32, i32) {
    %c0_i32 = arith.constant 0 : i32
    %c0_i32_0 = arith.constant 0 : i32
    %c0_i32_1 = arith.constant 0 : i32
    return %c0_i32, %c0_i32_0 : i32, i32
  }
  func.func @transform_2(%arg0: i32) -> (i32, i32) {
    %c0_i32 = arith.constant 0 : i32
    %c0_i32_0 = arith.constant 0 : i32
    %c0_i32_1 = arith.constant 0 : i32
    return %c0_i32, %c0_i32_0 : i32, i32
  }
  func.func @transform_3(%arg0: i32) -> (i32, i32) {
    %c0_i32 = arith.constant 0 : i32
    %c0_i32_0 = arith.constant 0 : i32
    %c0_i32_1 = arith.constant 0 : i32
    return %c0_i32, %c0_i32_0 : i32, i32
  }
  func.func @transform_4(%arg0: i32) -> (i32, i32) {
    %c0_i32 = arith.constant 0 : i32
    %c0_i32_0 = arith.constant 0 : i32
    %c0_i32_1 = arith.constant 0 : i32
    return %c0_i32, %c0_i32_0 : i32, i32
  }
  func.func @transform_5(%arg0: i32) -> (i32, i32) {
    %c0_i32 = arith.constant 0 : i32
    %c0_i32_0 = arith.constant 0 : i32
    return %arg0, %c0_i32 : i32, i32
  }
}

</mosaic_0001>

<llo_original>
// kernel: tpu_custom_call.1
$region0: #{tpu_custom_call.1}
  #allocation0 [shape = 'u32[]', space=smem, size = 0x4, offset = 0x4, fixed_abs, tag = 'smem constant byte address 0x4 - core index']
  #allocation1 [shape = 'u32[72,128]{1,0:T(1,128)}', space=vmem, size = 0x9000, scoped, tag = 'internal scratch']
  %s0 = inlined_call_operand.vmem [shape: f32[256,56], index: 0, kind: input, shape index: {}]
  %s1 = inlined_call_operand.vmem [shape: f32[56,32], index: 1, kind: input, shape index: {}]
  %s2 = inlined_call_operand.vmem [shape: f32[1,32], index: 2, kind: input, shape index: {}]
  %s3 = inlined_call_operand.vmem [shape: f32[32,2], index: 3, kind: input, shape index: {}]
  %s4 = inlined_call_operand.vmem [shape: f32[1,2], index: 4, kind: input, shape index: {}]
  %s5 = inlined_call_operand.vmem [shape: f32[256,2], index: 5, kind: output, shape index: {}]
  %s6 = sld [smem:[#allocation0]]
  $region53: #{tpu_custom_call.1} parent=0
    _
  %s8 = ssub.s32 1, %s6
  %s9 = scalar_select 0, %s8, %s6
  loop: start=0, step=1, limit=4
  $region2: #{tpu_custom_call.1} parent=0 // loop_pre_header
    _
  $region3: #{tpu_custom_call.1} parent=0 // loop_header
    %s11 = sphi 0, %s15
    %p12 = scmp.ge.s32.totalorder %s11, 4
    %s21 = sphi 0, %s23
    %s24 = sphi 0, %s21
    %s25 = sphi 0, %s24
    %s41 = sphi 0, %s25
    %s45 = sphi 0, %s45
    %s47 = sphi 0, %s45
    %s48 = sphi 0, %s47
    %s62 = sphi 0, %s48
    %s66 = sphi 0, %s66
    %s68 = sphi 0, %s66
    %s69 = sphi 0, %s68
    %s83 = sphi 0, %s69
    %s87 = sphi 0, %s87
    %s89 = sphi 0, %s87
    %s90 = sphi 0, %s89
    %s104 = sphi 0, %s90
    %s108 = sphi 0, %s108
    %s110 = sphi 0, %s108
    %s111 = sphi 0, %s110
    %s125 = sphi 0, %s111
    %s131 = sphi 0, %s133
    %s134 = sphi 0, %s131
    %s135 = sphi 0, %s134
    %s151 = sphi 0, %s135
  $region4: #{tpu_custom_call.1} parent=0 // loop_header_branch
    %14 = sbr.rel (%p12) target = $region8
  $region5: #{tpu_custom_call.1} parent=0 // loop_body
    %s16 = ssub.s32 %s11, 1
    %s17 = ssub.s32 %s11, 2
    %s18 = sadd.s32 %s11, 1
    %s19 = ssub.s32 %s11, %s18
    %p20 = scmp.eq.s32.totalorder %s19, 0
    %s22 = sadd.s32 %s21, 1
    %s23 = scalar_select %p20, %s21, %s22
    %p26 = pneg %p20
    %p27 = scmp.eq.s32.totalorder %s11, 1
    %p28 = por %p26, %p27
    %p29 = scmp.ne.s32.totalorder %s21, %s24
    %p30 = scmp.eq.s32.totalorder %s11, 0
    %p31 = por %p29, %p30
    %p32 = scmp.ne.s32.totalorder %s21, %s24
    %p33 = scmp.eq.s32.totalorder %s16, 1
    %p34 = por %p32, %p33
    %p35 = scmp.ne.s32.totalorder %s24, %s25
    %p36 = scmp.eq.s32.totalorder %s16, 0
    %p37 = por %p35, %p36
    %p38 = scmp.ne.s32.totalorder %s24, %s25
    %p39 = scmp.eq.s32.totalorder %s17, 1
    %p40 = por %p38, %p39
    %p42 = scmp.ne.s32.totalorder %s25, %s41
    %p43 = scmp.eq.s32.totalorder %s17, 0
    %p44 = por %p42, %p43
    %s46 = sadd.s32 %s45, 1
    %p49 = scmp.eq.s32.totalorder %s11, 1
    %p50 = scmp.ne.s32.totalorder %s45, %s47
    %p51 = scmp.eq.s32.totalorder %s11, 0
    %p52 = por %p50, %p51
    %p53 = scmp.ne.s32.totalorder %s45, %s47
    %p54 = scmp.eq.s32.totalorder %s16, 1
    %p55 = por %p53, %p54
    %p56 = scmp.ne.s32.totalorder %s47, %s48
    %p57 = scmp.eq.s32.totalorder %s16, 0
    %p58 = por %p56, %p57
    %p59 = scmp.ne.s32.totalorder %s47, %s48
    %p60 = scmp.eq.s32.totalorder %s17, 1
    %p61 = por %p59, %p60
    %p63 = scmp.ne.s32.totalorder %s48, %s62
    %p64 = scmp.eq.s32.totalorder %s17, 0
    %p65 = por %p63, %p64
    %s67 = sadd.s32 %s66, 1
    %p70 = scmp.eq.s32.totalorder %s11, 1
    %p71 = scmp.ne.s32.totalorder %s66, %s68
    %p72 = scmp.eq.s32.totalorder %s11, 0
    %p73 = por %p71, %p72
    %p74 = scmp.ne.s32.totalorder %s66, %s68
    %p75 = scmp.eq.s32.totalorder %s16, 1
    %p76 = por %p74, %p75
    %p77 = scmp.ne.s32.totalorder %s68, %s69
    %p78 = scmp.eq.s32.totalorder %s16, 0
    %p79 = por %p77, %p78
    %p80 = scmp.ne.s32.totalorder %s68, %s69
    %p81 = scmp.eq.s32.totalorder %s17, 1
    %p82 = por %p80, %p81
    %p84 = scmp.ne.s32.totalorder %s69, %s83
    %p85 = scmp.eq.s32.totalorder %s17, 0
    %p86 = por %p84, %p85
    %s88 = sadd.s32 %s87, 1
    %p91 = scmp.eq.s32.totalorder %s11, 1
    %p92 = scmp.ne.s32.totalorder %s87, %s89
    %p93 = scmp.eq.s32.totalorder %s11, 0
    %p94 = por %p92, %p93
    %p95 = scmp.ne.s32.totalorder %s87, %s89
    %p96 = scmp.eq.s32.totalorder %s16, 1
    %p97 = por %p95, %p96
    %p98 = scmp.ne.s32.totalorder %s89, %s90
    %p99 = scmp.eq.s32.totalorder %s16, 0
    %p100 = por %p98, %p99
    %p101 = scmp.ne.s32.totalorder %s89, %s90
    %p102 = scmp.eq.s32.totalorder %s17, 1
    %p103 = por %p101, %p102
    %p105 = scmp.ne.s32.totalorder %s90, %s104
    %p106 = scmp.eq.s32.totalorder %s17, 0
    %p107 = por %p105, %p106
    %s109 = sadd.s32 %s108, 1
    %p112 = scmp.eq.s32.totalorder %s11, 1
    %p113 = scmp.ne.s32.totalorder %s108, %s110
    %p114 = scmp.eq.s32.totalorder %s11, 0
    %p115 = por %p113, %p114
    %p116 = scmp.ne.s32.totalorder %s108, %s110
    %p117 = scmp.eq.s32.totalorder %s16, 1
    %p118 = por %p116, %p117
    %p119 = scmp.ne.s32.totalorder %s110, %s111
    %p120 = scmp.eq.s32.totalorder %s16, 0
    %p121 = por %p119, %p120
    %p122 = scmp.ne.s32.totalorder %s110, %s111
    %p123 = scmp.eq.s32.totalorder %s17, 1
    %p124 = por %p122, %p123
    %p126 = scmp.ne.s32.totalorder %s111, %s125
    %p127 = scmp.eq.s32.totalorder %s17, 0
    %p128 = por %p126, %p127
    %s129 = ssub.s32 %s11, %s18
    %p130 = scmp.eq.s32.totalorder %s129, 0
    %s132 = sadd.s32 %s131, 1
    %s133 = scalar_select %p130, %s131, %s132
    %p136 = pneg %p130
    %p137 = scmp.eq.s32.totalorder %s11, 1
    %p138 = por %p136, %p137
    %p139 = scmp.ne.s32.totalorder %s131, %s134
    %p140 = scmp.eq.s32.totalorder %s11, 0
    %p141 = por %p139, %p140
    %p142 = scmp.ne.s32.totalorder %s131, %s134
    %p143 = scmp.eq.s32.totalorder %s16, 1
    %p144 = por %p142, %p143
    %p145 = scmp.ne.s32.totalorder %s134, %s135
    %p146 = scmp.eq.s32.totalorder %s16, 0
    %p147 = por %p145, %p146
    %p148 = scmp.ne.s32.totalorder %s134, %s135
    %p149 = scmp.eq.s32.totalorder %s17, 1
    %p150 = por %p148, %p149
    %p152 = scmp.ne.s32.totalorder %s135, %s151
    %p153 = scmp.eq.s32.totalorder %s17, 0
    %p154 = por %p152, %p153
    %p155 = scmp.le.s32.totalorder 1, %s11
    %p156 = scmp.lt.s32.totalorder %s11, 3
    %p157 = pnand %p155, %p156
    %p158 = pneg %p157
    // Predicated region
    $region9: #{tpu_custom_call.1} parent=5 // pred_check
      _
    $region10: #{tpu_custom_call.1} parent=5 // pred_check_branch
      %160 = sbr.rel (%p157) target = $region12
    $region11: #{tpu_custom_call.1} parent=5 // pred_region
      %s161 = ssub.s32 %s11, 1
      // Predicated region
      $region13: #{tpu_custom_call.1} parent=11 // pred_check
        %p162 = pneg %p58
      $region14: #{tpu_custom_call.1} parent=11 // pred_check_branch
        %164 = sbr.rel (%p162) target = $region16
      $region15: #{tpu_custom_call.1} parent=11 // pred_region
        _
      $region16: #{tpu_custom_call.1} parent=11 // pred_fallthru
        _
      // Predicated region
      $region17: #{tpu_custom_call.1} parent=11 // pred_check
        %p165 = pneg %p79
      $region18: #{tpu_custom_call.1} parent=11 // pred_check_branch
        %167 = sbr.rel (%p165) target = $region20
      $region19: #{tpu_custom_call.1} parent=11 // pred_region
        _
      $region20: #{tpu_custom_call.1} parent=11 // pred_fallthru
        _
      // Predicated region
      $region21: #{tpu_custom_call.1} parent=11 // pred_check
        %p168 = pneg %p100
      $region22: #{tpu_custom_call.1} parent=11 // pred_check_branch
        %170 = sbr.rel (%p168) target = $region24
      $region23: #{tpu_custom_call.1} parent=11 // pred_region
        _
      $region24: #{tpu_custom_call.1} parent=11 // pred_fallthru
        _
      // Predicated region
      $region25: #{tpu_custom_call.1} parent=11 // pred_check
        %p171 = pneg %p121
      $region26: #{tpu_custom_call.1} parent=11 // pred_check_branch
        %173 = sbr.rel (%p171) target = $region28
      $region27: #{tpu_custom_call.1} parent=11 // pred_region
        _
      $region28: #{tpu_custom_call.1} parent=11 // pred_fallthru
        _
    $region12: #{tpu_custom_call.1} parent=5 // pred_fallthru
      _
    %p174 = scmp.lt.s32.totalorder %s11, 2
    // Predicated region
    $region29: #{tpu_custom_call.1} parent=5 // pred_check
      %p175 = pneg %p174
    $region30: #{tpu_custom_call.1} parent=5 // pred_check_branch
      %177 = sbr.rel (%p175) target = $region32
    $region31: #{tpu_custom_call.1} parent=5 // pred_region
      // Predicated region
      $region33: #{tpu_custom_call.1} parent=31 // pred_check
        %p178 = pneg %p31
      $region34: #{tpu_custom_call.1} parent=31 // pred_check_branch
        %180 = sbr.rel (%p178) target = $region36
      $region35: #{tpu_custom_call.1} parent=31 // pred_region
        %s181 = smul.u32 16, %s11
        %p182 = scmp.lt.s32.totalorder %s181, 31
        %s183 = scalar_select %p182, %s181, 31
        %s184 = smul.addr %s183, 8
        %s185 = scalar_lea.vmem %s0, %s184
        %s186 = smul.u32 16, %s11
      $region36: #{tpu_custom_call.1} parent=31 // pred_fallthru
        _
    $region32: #{tpu_custom_call.1} parent=5 // pred_fallthru
      _
    %p187 = scmp.le.s32.totalorder 1, %s11
    %p188 = scmp.lt.s32.totalorder %s11, 3
    %p189 = pnand %p187, %p188
    %p190 = pneg %p189
    // Predicated region
    $region37: #{tpu_custom_call.1} parent=5 // pred_check
      _
    $region38: #{tpu_custom_call.1} parent=5 // pred_check_branch
      %192 = sbr.rel (%p189) target = $region40
    $region39: #{tpu_custom_call.1} parent=5 // pred_region
      %s193 = ssub.s32 %s11, 1
      %s194 = smul.u32 16, %s16
      %p195 = scmp.lt.s32.totalorder %s194, 31
      %s196 = scalar_select %p195, %s194, 31
      %s197 = smul.addr %s196, 8
      %s198 = scalar_lea.vmem %s0, %s197
      %p199 = pneg %p37
      %p200 = pneg %p34
      %p201 = pneg %p58
      %p202 = pneg %p55
      %p203 = pneg %p79
      %p204 = pneg %p76
      %p205 = pneg %p100
      %p206 = pneg %p97
      %p207 = pneg %p121
      %p208 = pneg %p118
      %p209 = pneg %p147
      %p210 = pneg %p144
      %s211 = smul.u32 16, %s16
      %p212 = scmp.lt.s32.totalorder %s211, 31
      %s213 = scalar_select %p212, %s211, 31
      %s214 = smul.addr %s213, 8
      %s215 = scalar_lea.vmem %s5, %s214
      %s216 = smul.u32 16, %s16
      %p217 = scmp.lt.s32.totalorder %s216, 31
      %s218 = scalar_select %p217, %s216, 31
      %s219 = smul.addr %s218, 8
      %s220 = scalar_lea.vmem %s0, %s219
      %s221 = smul.u32 16, %s16
      %s222 = smul.u32 16, %s16
      %p223 = scmp.lt.s32.totalorder %s222, 31
      %s224 = scalar_select %p223, %s222, 31
      %s225 = smul.addr %s224, 8
      %s226 = scalar_lea.vmem %s5, %s225
      %s227 = smul.u32 16, %s16
      %v228 = vld [vmem:[%s220] sm:$0xff]
      %v229 = vld [vmem:[%s220 + $0x8] sm:$0xff]
      %v230 = vld [vmem:[%s220 + $0x10] sm:$0xff]
      %v231 = vld [vmem:[%s220 + $0x18] sm:$0xff]
      %v232 = vld [vmem:[%s220 + $0x20] sm:$0xff]
      %v233 = vld [vmem:[%s220 + $0x28] sm:$0xff]
      %v234 = vld [vmem:[%s220 + $0x30] sm:$0xff]
      %v235 = vld [vmem:[%s220 + $0x38] sm:$0xff]
      %v236 = vld [vmem:[%s220 + $0x40] sm:$0xff]
      %v237 = vld [vmem:[%s220 + $0x48] sm:$0xff]
      %v238 = vld [vmem:[%s220 + $0x50] sm:$0xff]
      %v239 = vld [vmem:[%s220 + $0x58] sm:$0xff]
      %v240 = vld [vmem:[%s220 + $0x60] sm:$0xff]
      %v241 = vld [vmem:[%s220 + $0x68] sm:$0xff]
      %v242 = vld [vmem:[%s220 + $0x70] sm:$0xff]
      %v243 = vld [vmem:[%s220 + $0x78] sm:$0xff]
      %v244 = vld [vmem:[%s2] sm:$0x1]
      %v245 = vld [vmem:[%s4] sm:$0x1]
      %v246 = vld [vmem:[%s1] sm:$0xff]
      %v247 = vld [vmem:[%s1 + $0x8] sm:$0xff]
      %v248 = vld [vmem:[%s1 + $0x10] sm:$0xff]
      %v249 = vld [vmem:[%s1 + $0x18] sm:$0xff]
      %v250 = vld [vmem:[%s1 + $0x20] sm:$0xff]
      %v251 = vld [vmem:[%s1 + $0x28] sm:$0xff]
      %v252 = vld [vmem:[%s1 + $0x30] sm:$0xff]
      %v254 = vperm.slane %v244, 0
      %vm256 = vcmask 457728
      %v258 = vsel %vm256, %v228, 0
      %v261 = vsel %vm256, %v229, 0
      %v264 = vsel %vm256, %v230, 0
      %v267 = vsel %vm256, %v231, 0
      %v270 = vsel %vm256, %v232, 0
      %v273 = vsel %vm256, %v233, 0
      %v276 = vsel %vm256, %v234, 0
      %v279 = vsel %vm256, %v235, 0
      %v282 = vsel %vm256, %v236, 0
      %v285 = vsel %vm256, %v237, 0
      %v288 = vsel %vm256, %v238, 0
      %v291 = vsel %vm256, %v239, 0
      %v294 = vsel %vm256, %v240, 0
      %v297 = vsel %vm256, %v241, 0
      %v300 = vsel %vm256, %v242, 0
      %v303 = vsel %vm256, %v243, 0
      %305 = vmatpush.msra.mxu0 0.0
      %306 = vmatpush.msra.mxu0 0.0
      %307 = vmatpush.msra.mxu0 0.0
      %308 = vmatpush.msra.mxu0 0.0
      %309 = vmatpush.msra.mxu0 0.0
      %310 = vmatpush.msra.mxu0 0.0
      %311 = vmatpush.msra.mxu0 0.0
      %312 = vmatpush.msra.mxu0 0.0
      %313 = vmatpush.msra.mxu0 0.0
      %314 = vmatpush.msra.mxu0 %v252
      %315 = vmatpush.msra.mxu0 %v251
      %316 = vmatpush.msra.mxu0 %v250
      %317 = vmatpush.msra.mxu0 %v249
      %318 = vmatpush.msra.mxu0 %v248
      %319 = vmatpush.msra.mxu0 %v247
      %320 = vmatpush.msra.mxu0 %v246
      %321 = vmatmul.f32.gmra.mxu0 %v258
      %v322 = vpop.f32.mrf.mxu0
      %v323 = vadd.f32 %v254, %v322
      %324 = vmatmul.f32.gmra.mxu0 %v261
      %v325 = vpop.f32.mrf.mxu0
      %v326 = vadd.f32 %v254, %v325
      %327 = vmatmul.f32.gmra.mxu0 %v264
      %v328 = vpop.f32.mrf.mxu0
      %v329 = vadd.f32 %v254, %v328
      %330 = vmatmul.f32.gmra.mxu0 %v267
      %v331 = vpop.f32.mrf.mxu0
      %v332 = vadd.f32 %v254, %v331
      %333 = vmatmul.f32.gmra.mxu0 %v270
      %v334 = vpop.f32.mrf.mxu0
      %v335 = vadd.f32 %v254, %v334
      %336 = vmatmul.f32.gmra.mxu0 %v273
      %v337 = vpop.f32.mrf.mxu0
      %v338 = vadd.f32 %v254, %v337
      %339 = vmatmul.f32.gmra.mxu0 %v276
      %v340 = vpop.f32.mrf.mxu0
      %v341 = vadd.f32 %v254, %v340
      %342 = vmatmul.f32.gmra.mxu0 %v279
      %v343 = vpop.f32.mrf.mxu0
      %v344 = vadd.f32 %v254, %v343
      %345 = vmatmul.f32.gmra.mxu0 %v282
      %v346 = vpop.f32.mrf.mxu0
      %v347 = vadd.f32 %v254, %v346
      %348 = vmatmul.f32.gmra.mxu0 %v285
      %v349 = vpop.f32.mrf.mxu0
      %v350 = vadd.f32 %v254, %v349
      %351 = vmatmul.f32.gmra.mxu0 %v288
      %v352 = vpop.f32.mrf.mxu0
      %v353 = vadd.f32 %v254, %v352
      %354 = vmatmul.f32.gmra.mxu0 %v291
      %v355 = vpop.f32.mrf.mxu0
      %v356 = vadd.f32 %v254, %v355
      %357 = vmatmul.f32.gmra.mxu0 %v294
      %v358 = vpop.f32.mrf.mxu0
      %v359 = vadd.f32 %v254, %v358
      %360 = vmatmul.f32.gmra.mxu0 %v297
      %v361 = vpop.f32.mrf.mxu0
      %v362 = vadd.f32 %v254, %v361
      %363 = vmatmul.f32.gmra.mxu0 %v300
      %v364 = vpop.f32.mrf.mxu0
      %v365 = vadd.f32 %v254, %v364
      %366 = vmatmul.f32.gmra.mxu0 %v303
      %v367 = vpop.f32.mrf.mxu0
      %v368 = vadd.f32 %v254, %v367
      %369 = vdwg.mxu0
      %v370 = vmax.f32 %v323, 0.0
      %v371 = vmax.f32 %v326, 0.0
      %v372 = vmax.f32 %v329, 0.0
      %v373 = vmax.f32 %v332, 0.0
      %v374 = vmax.f32 %v335, 0.0
      %v375 = vmax.f32 %v338, 0.0
      %v376 = vmax.f32 %v341, 0.0
      %v377 = vmax.f32 %v344, 0.0
      %v378 = vmax.f32 %v347, 0.0
      %v379 = vmax.f32 %v350, 0.0
      %v380 = vmax.f32 %v353, 0.0
      %v381 = vmax.f32 %v356, 0.0
      %v382 = vmax.f32 %v359, 0.0
      %v383 = vmax.f32 %v362, 0.0
      %v384 = vmax.f32 %v365, 0.0
      %v385 = vmax.f32 %v368, 0.0
      %v386 = vld [vmem:[%s3] sm:$0xff]
      %v387 = vld [vmem:[%s3 + $0x8] sm:$0xff]
      %v388 = vld [vmem:[%s3 + $0x10] sm:$0xff]
      %v389 = vld [vmem:[%s3 + $0x18] sm:$0xff]
      %v391 = vperm.slane %v245, 0
      %vm393 = vcmask 261120
      %v395 = vsel %vm393, %v370, 0
      %v398 = vsel %vm393, %v371, 0
      %v401 = vsel %vm393, %v372, 0
      %v404 = vsel %vm393, %v373, 0
      %v407 = vsel %vm393, %v374, 0
      %v410 = vsel %vm393, %v375, 0
      %v413 = vsel %vm393, %v376, 0
      %v416 = vsel %vm393, %v377, 0
      %v419 = vsel %vm393, %v378, 0
      %v422 = vsel %vm393, %v379, 0
      %v425 = vsel %vm393, %v380, 0
      %v428 = vsel %vm393, %v381, 0
      %v431 = vsel %vm393, %v382, 0
      %v434 = vsel %vm393, %v383, 0
      %v437 = vsel %vm393, %v384, 0
      %v440 = vsel %vm393, %v385, 0
      %442 = vmatpush.msra.mxu0 0.0
      %443 = vmatpush.msra.mxu0 0.0
      %444 = vmatpush.msra.mxu0 0.0
      %445 = vmatpush.msra.mxu0 0.0
      %446 = vmatpush.msra.mxu0 0.0
      %447 = vmatpush.msra.mxu0 0.0
      %448 = vmatpush.msra.mxu0 0.0
      %449 = vmatpush.msra.mxu0 0.0
      %450 = vmatpush.msra.mxu0 0.0
      %451 = vmatpush.msra.mxu0 0.0
      %452 = vmatpush.msra.mxu0 0.0
      %453 = vmatpush.msra.mxu0 0.0
      %454 = vmatpush.msra.mxu0 %v389
      %455 = vmatpush.msra.mxu0 %v388
      %456 = vmatpush.msra.mxu0 %v387
      %457 = vmatpush.msra.mxu0 %v386
      %458 = vmatmul.f32.gmra.mxu0 %v395
      %v459 = vpop.f32.mrf.mxu0
      %v460 = vadd.f32 %v391, %v459
      %461 = vmatmul.f32.gmra.mxu0 %v398
      %v462 = vpop.f32.mrf.mxu0
      %v463 = vadd.f32 %v391, %v462
      %464 = vmatmul.f32.gmra.mxu0 %v401
      %v465 = vpop.f32.mrf.mxu0
      %v466 = vadd.f32 %v391, %v465
      %467 = vmatmul.f32.gmra.mxu0 %v404
      %v468 = vpop.f32.mrf.mxu0
      %v469 = vadd.f32 %v391, %v468
      %470 = vmatmul.f32.gmra.mxu0 %v407
      %v471 = vpop.f32.mrf.mxu0
      %v472 = vadd.f32 %v391, %v471
      %473 = vmatmul.f32.gmra.mxu0 %v410
      %v474 = vpop.f32.mrf.mxu0
      %v475 = vadd.f32 %v391, %v474
      %476 = vmatmul.f32.gmra.mxu0 %v413
      %v477 = vpop.f32.mrf.mxu0
      %v478 = vadd.f32 %v391, %v477
      %479 = vmatmul.f32.gmra.mxu0 %v416
      %v480 = vpop.f32.mrf.mxu0
      %v481 = vadd.f32 %v391, %v480
      %482 = vmatmul.f32.gmra.mxu0 %v419
      %v483 = vpop.f32.mrf.mxu0
      %v484 = vadd.f32 %v391, %v483
      %485 = vmatmul.f32.gmra.mxu0 %v422
      %v486 = vpop.f32.mrf.mxu0
      %v487 = vadd.f32 %v391, %v486
      %488 = vmatmul.f32.gmra.mxu0 %v425
      %v489 = vpop.f32.mrf.mxu0
      %v490 = vadd.f32 %v391, %v489
      %491 = vmatmul.f32.gmra.mxu0 %v428
      %v492 = vpop.f32.mrf.mxu0
      %v493 = vadd.f32 %v391, %v492
      %494 = vmatmul.f32.gmra.mxu0 %v431
      %v495 = vpop.f32.mrf.mxu0
      %v496 = vadd.f32 %v391, %v495
      %497 = vmatmul.f32.gmra.mxu0 %v434
      %v498 = vpop.f32.mrf.mxu0
      %v499 = vadd.f32 %v391, %v498
      %500 = vmatmul.f32.gmra.mxu0 %v437
      %v501 = vpop.f32.mrf.mxu0
      %v502 = vadd.f32 %v391, %v501
      %503 = vmatmul.f32.gmra.mxu0 %v440
      %v504 = vpop.f32.mrf.mxu0
      %v505 = vadd.f32 %v391, %v504
      %506 = vdwg.mxu0
      %vm507 = vcmask 15360
      %508 = vst.msk [vmem:[%s226] sm:$0xff] %vm507, %v460
      %509 = vst.msk [vmem:[%s226 + $0x8] sm:$0xff] %vm507, %v463
      %510 = vst.msk [vmem:[%s226 + $0x10] sm:$0xff] %vm507, %v466
      %511 = vst.msk [vmem:[%s226 + $0x18] sm:$0xff] %vm507, %v469
      %512 = vst.msk [vmem:[%s226 + $0x20] sm:$0xff] %vm507, %v472
      %513 = vst.msk [vmem:[%s226 + $0x28] sm:$0xff] %vm507, %v475
      %514 = vst.msk [vmem:[%s226 + $0x30] sm:$0xff] %vm507, %v478
      %515 = vst.msk [vmem:[%s226 + $0x38] sm:$0xff] %vm507, %v481
      %516 = vst.msk [vmem:[%s226 + $0x40] sm:$0xff] %vm507, %v484
      %517 = vst.msk [vmem:[%s226 + $0x48] sm:$0xff] %vm507, %v487
      %518 = vst.msk [vmem:[%s226 + $0x50] sm:$0xff] %vm507, %v490
      %519 = vst.msk [vmem:[%s226 + $0x58] sm:$0xff] %vm507, %v493
      %520 = vst.msk [vmem:[%s226 + $0x60] sm:$0xff] %vm507, %v496
      %521 = vst.msk [vmem:[%s226 + $0x68] sm:$0xff] %vm507, %v499
      %522 = vst.msk [vmem:[%s226 + $0x70] sm:$0xff] %vm507, %v502
      %523 = vst.msk [vmem:[%s226 + $0x78] sm:$0xff] %vm507, %v505
      %s524 = smul.u32 16, %s16
      %p525 = scmp.lt.s32.totalorder %s524, 31
      %s526 = scalar_select %p525, %s524, 31
      %s527 = smul.addr %s526, 8
      %s528 = scalar_lea.vmem %s5, %s527
      // Predicated region
      $region41: #{tpu_custom_call.1} parent=39 // pred_check
        %p529 = pneg %p144
      $region42: #{tpu_custom_call.1} parent=39 // pred_check_branch
        %531 = sbr.rel (%p529) target = $region44
      $region43: #{tpu_custom_call.1} parent=39 // pred_region
        %s532 = smul.u32 16, %s16
      $region44: #{tpu_custom_call.1} parent=39 // pred_fallthru
        _
    $region40: #{tpu_custom_call.1} parent=5 // pred_fallthru
      _
    %p533 = scmp.le.s32.totalorder 2, %s11
    // Predicated region
    $region45: #{tpu_custom_call.1} parent=5 // pred_check
      %p534 = pneg %p533
    $region46: #{tpu_custom_call.1} parent=5 // pred_check_branch
      %536 = sbr.rel (%p534) target = $region48
    $region47: #{tpu_custom_call.1} parent=5 // pred_region
      %s537 = ssub.s32 %s11, 2
      // Predicated region
      $region49: #{tpu_custom_call.1} parent=47 // pred_check
        %p538 = pneg %p150
      $region50: #{tpu_custom_call.1} parent=47 // pred_check_branch
        %540 = sbr.rel (%p538) target = $region52
      $region51: #{tpu_custom_call.1} parent=47 // pred_region
        %s541 = smul.u32 16, %s17
        %p542 = scmp.lt.s32.totalorder %s541, 31
        %s543 = scalar_select %p542, %s541, 31
        %s544 = smul.addr %s543, 8
        %s545 = scalar_lea.vmem %s5, %s544
      $region52: #{tpu_custom_call.1} parent=47 // pred_fallthru
        _
    $region48: #{tpu_custom_call.1} parent=5 // pred_fallthru
      _
  $region6: #{tpu_custom_call.1} parent=0 // loop_footer
    %s15 = sadd.s32 1, %s11
  $region7: #{tpu_custom_call.1} parent=0 // loop_footer_branch
    %10 = sbr.rel target = $region3
  $region8: #{tpu_custom_call.1} parent=0 // loop_exit
    _

</llo_original>
